<compile_context>
chip_gen: v7x
topology: tpu7x:2x2x1
jax: 0.10.0
libtpu: 0.0.40
codegen_flags: <defaults>
</compile_context>

<pallas_src>
import jax
import jax.numpy as jnp
from jax.experimental import pallas as pl
from jax.experimental.pallas import tpu as pltpu

_LANE = 128
_SMALL_INPUT_BYTES = 1 * 1024 * 1024  # below this, kernel dispatch overhead dominates


def _add_pe_kernel(x_ref, pe_ref, o_ref):
    # x_ref / o_ref: (TB, TW) lane-dense tiles of the flattened (B, T*E) array.
    # pe_ref: (1, TW) tile of the flattened positional row (sublane-broadcast add).
    o_ref[...] = (x_ref[...] + pe_ref[...]).astype(o_ref.dtype)


def _tpu_generation_params():
    """(target_block_bytes, vmem_limit_bytes, min_parallel_blocks) per TPU generation."""
    target = 4 * 1024 * 1024          # v5e/v6e sweet spot for streaming adds
    vmem_limit = 32 * 1024 * 1024
    min_blocks = 1
    try:
        info = pltpu.get_tpu_info()
        vmem_cap = int(getattr(info, "vmem_capacity_bytes", 128 * 1024 * 1024))
        if vmem_cap <= 64 * 1024 * 1024:
            # v7x-class: 2 TensorCores/chip, ~3.2 TB/s HBM, only 64 MiB VMEM.
            target = 8 * 1024 * 1024
            vmem_limit = 48 * 1024 * 1024
            min_blocks = 2
    except Exception:
        pass
    return target, vmem_limit, min_blocks


def _pick_tiles(rows, cols, itemsize, *, target_bytes, min_blocks):
    """Pick (row_tile, col_tile) targeting ~target_bytes blocks under the (8,128) rule."""
    # dtype-aware sublane packing: 8 rows for f32, 16 for bf16, 32 for int8/fp8.
    sublane = 8 * max(1, 4 // max(1, itemsize))

    # Row (sublane) tile over the batch axis: full B, or a multiple of the packed sublane.
    rows_for_target = max(1, target_bytes // max(1, cols * itemsize))
    if rows_for_target >= rows:
        tb = rows
    else:
        tb = min(max(sublane, (rows_for_target // sublane) * sublane), rows)

    # Column (lane) tile over the flattened T*E axis: full width, or a multiple of 128.
    cols_for_target = max(1, target_bytes // max(1, tb * itemsize))
    if cols_for_target >= cols or cols <= _LANE:
        tw = cols
    else:
        tw = max(_LANE, (cols_for_target // _LANE) * _LANE)
        # Prefer a tile that divides cols evenly (avoid ragged masked last tile).
        if cols % _LANE == 0 and cols % tw != 0:
            cand = tw
            while cand >= _LANE:
                if cols % cand == 0:
                    tw = cand
                    break
                cand -= _LANE

    # v7x: guarantee >= 2 blocks so both TensorCores get work (no-op on v5e/v6e).
    if min_blocks > 1 and pl.cdiv(rows, tb) * pl.cdiv(cols, tw) < min_blocks:
        if cols >= min_blocks * _LANE:
            tw = max(_LANE, ((pl.cdiv(cols, min_blocks) + _LANE - 1) // _LANE) * _LANE)
        elif rows >= min_blocks * sublane:
            tb = max(sublane,
                     ((pl.cdiv(rows, min_blocks) + sublane - 1) // sublane) * sublane)
    return tb, tw


def positional_encoding_forward(x: jax.Array, pe: jax.Array, *,
                                force_kernel: bool = False,
                                target_bytes: int | None = None) -> jax.Array:
    """x: (B, T, E); pe: (block_size, E) with block_size >= T. Returns x + pe[:T]."""
    B, T, E = x.shape
    assert T <= pe.shape[0], f"sequence length {T} exceeds pe table rows {pe.shape[0]}"
    assert E == pe.shape[1], f"embed size mismatch: x has {E}, pe has {pe.shape[1]}"

    pe_t = pe[:T, :].astype(x.dtype)          # (T, E) — static slice, dtype match
    cols = T * E
    itemsize = jnp.dtype(x.dtype).itemsize

    # Tiny-input bypass: plain XLA add is faster (and fusible) below ~1 MiB.
    if not force_kernel and B * cols * itemsize < _SMALL_INPUT_BYTES:
        return x + pe_t

    x2 = x.reshape(B, cols)                   # free row-major, lane-dense flatten
    pe2 = pe_t.reshape(1, cols)

    gen_target, vmem_limit, min_blocks = _tpu_generation_params()
    if target_bytes is None:
        target_bytes = gen_target

    tb, tw = _pick_tiles(B, cols, itemsize,
                         target_bytes=target_bytes, min_blocks=min_blocks)
    n_row = pl.cdiv(B, tb)
    n_col = pl.cdiv(cols, tw)
    # Row axis innermost: pe's block index (0, j) is constant across the inner sweep,
    # so pe is fetched only n_col times (= cols bytes total), not once per grid step.
    grid = (n_col, n_row)

    cost = pl.CostEstimate(
        flops=B * cols,
        transcendentals=0,
        bytes_accessed=(2 * B * cols + cols) * itemsize,
    )

    y2 = pl.pallas_call(
        _add_pe_kernel,
        out_shape=jax.ShapeDtypeStruct((B, cols), x.dtype),
        grid_spec=pltpu.PrefetchScalarGridSpec(
            num_scalar_prefetch=0,
            grid=grid,
            in_specs=[
                pl.BlockSpec((tb, tw), lambda j, i: (i, j)),   # x tile
                pl.BlockSpec((1, tw), lambda j, i: (0, j)),    # pe: col-indexed only
            ],
            out_specs=pl.BlockSpec((tb, tw), lambda j, i: (i, j)),
        ),
        compiler_params=pltpu.CompilerParams(
            dimension_semantics=("parallel", "parallel"),
            vmem_limit_bytes=vmem_limit,
        ),
        cost_estimate=cost,
    )(x2, pe2)

    return y2.reshape(B, T, E)


def make_pe(block_size: int, embed_size: int, dtype=jnp.float32) -> jax.Array:
    """Sinusoidal table matching the PyTorch __init__ loop (requires even embed_size)."""
    assert embed_size % 2 == 0, "embed_size must be even (as in the PyTorch module)"
    pos = jnp.arange(block_size, dtype=jnp.float32)[:, None]          # (S, 1)
    i = jnp.arange(0, embed_size, 2, dtype=jnp.float32)[None, :]      # (1, E//2)
    ang = pos / jnp.power(10000.0, i / embed_size)                    # (S, E//2)
    pe = jnp.stack([jnp.sin(ang), jnp.cos(ang)], axis=-1).reshape(block_size, embed_size)
    return pe.astype(dtype)


if __name__ == "__main__":
    key = jax.random.PRNGKey(0)

    # --- Small demo shape (module-scale): force the kernel path to validate it. ---
    B, T, E = 2, 8, 32
    block_size = 16
    x = jax.random.normal(key, (B, T, E), dtype=jnp.float32)
    pe = make_pe(block_size, E)

    y = positional_encoding_forward(x, pe, force_kernel=True)
    y = jax.block_until_ready(y)
    y_ref = x + pe[:T, :]
    assert jnp.allclose(y, y_ref, atol=1e-6, rtol=1e-6), "small-shape mismatch"

    # Default path for tiny inputs (plain-JAX bypass) must also match.
    y_bypass = jax.block_until_ready(positional_encoding_forward(x, pe))
    assert jnp.allclose(y_bypass, y_ref, atol=1e-6, rtol=1e-6), "bypass mismatch"

    # --- Multi-tile check: exercises the reordered grid (pe resident across row tiles). ---
    B2, T2, E2 = 16, 64, 128
    x2 = jax.random.normal(jax.random.PRNGKey(1), (B2, T2, E2), dtype=jnp.float32)
    pe2 = make_pe(T2, E2)
    y2 = positional_encoding_forward(x2, pe2, force_kernel=True,
                                     target_bytes=32 * 1024)  # small tiles -> real grid
    y2 = jax.block_until_ready(y2)
    y2_ref = x2 + pe2[:T2, :]
    assert jnp.allclose(y2, y2_ref, atol=1e-6, rtol=1e-6), "multi-tile mismatch"

    print("KERNEL_OK")
</pallas_src>

<mosaic_0001>
module attributes {stable_mosaic.version = 11 : i64} {
  func.func @_add_pe_kernel(%arg0: i32, %arg1: i32, %arg2: memref<2x256xf32, #tpu.memory_space<vmem>>, %arg3: memref<1x256xf32, #tpu.memory_space<vmem>>, %arg4: memref<2x256xf32, #tpu.memory_space<vmem>>) attributes {dimension_semantics = [#tpu.dimension_semantics<parallel>, #tpu.dimension_semantics<parallel>], iteration_bounds = array<i64: 1, 1>, scalar_prefetch = 0 : i64, scratch_operands = 0 : i64, tpu.core_type = #tpu.core_type<tc>, window_params = [{transform_indices = @transform_0, window_bounds = array<i64: 2, 256>}, {transform_indices = @transform_1, window_bounds = array<i64: 1, 256>}, {transform_indices = @transform_2, window_bounds = array<i64: 2, 256>}]} {
    %c0 = arith.constant 0 : index
    %c0_0 = arith.constant 0 : index
    %0 = vector.load %arg2[%c0, %c0_0] : memref<2x256xf32, #tpu.memory_space<vmem>>, vector<2x256xf32>
    %c0_1 = arith.constant 0 : index
    %c0_2 = arith.constant 0 : index
    %1 = vector.load %arg3[%c0_1, %c0_2] : memref<1x256xf32, #tpu.memory_space<vmem>>, vector<1x256xf32>
    %2 = vector.broadcast %1 : vector<1x256xf32> to vector<2x256xf32>
    %3 = arith.addf %0, %2 : vector<2x256xf32>
    %c0_3 = arith.constant 0 : index
    %c0_4 = arith.constant 0 : index
    %4 = vector.load %arg4[%c0_3, %c0_4] : memref<2x256xf32, #tpu.memory_space<vmem>>, vector<2x256xf32>
    tpu.vector_store %arg4[%c0_3, %c0_4], %3 {strides = array<i32>} : memref<2x256xf32, #tpu.memory_space<vmem>>, vector<2x256xf32>,
    return
  }
  func.func @transform_0(%arg0: i32, %arg1: i32) -> (i32, i32) {
    %c0_i32 = arith.constant 0 : i32
    return %arg1, %arg0 : i32, i32
  }
  func.func @transform_1(%arg0: i32, %arg1: i32) -> (i32, i32) {
    %c0_i32 = arith.constant 0 : i32
    %c0_i32_0 = arith.constant 0 : i32
    return %c0_i32, %arg0 : i32, i32
  }
  func.func @transform_2(%arg0: i32, %arg1: i32) -> (i32, i32) {
    %c0_i32 = arith.constant 0 : i32
    return %arg1, %arg0 : i32, i32
  }
}

</mosaic_0001>

<llo_original>
// kernel: tpu_custom_call.1
$region0: #{tpu_custom_call.1}
  #allocation0 [shape = 'u32[]', space=smem, size = 0x4, offset = 0x4, fixed_abs, tag = 'smem constant byte address 0x4 - core index']
  #allocation1 [shape = 'u32[144,128]{1,0:T(1,128)}', space=vmem, size = 0x12000, scoped, tag = 'internal scratch']
  %s0 = inlined_call_operand.hbm [shape: f32[2,256], index: 0, kind: input, shape index: {}]
  %s1 = inlined_call_operand.vmem [shape: f32[1,256], index: 1, kind: input, shape index: {}]
  %s2 = inlined_call_operand.hbm [shape: f32[2,256], index: 2, kind: output, shape index: {}]
  %s3 = sld [smem:[#allocation0]]
  $region22: #{tpu_custom_call.1} parent=0
    _
  %s5 = ssub.s32 1, %s3
  %s6 = scalar_select 0, %s5, %s3
  $region1: #{tpu_custom_call.1} parent=0
    #allocation2 [shape = 'u8[2048]{0}', space=vmem, size = 0x800, scoped, tag = 'input window, operand 0, single buffered']
    #allocation3 [shape = 's32[1]{0}', space=sflag, size = 0x4, scoped, tag = 'scoped memory for tpu_custom_call.1']
    #allocation4 [shape = 's32[1]{0}', space=sflag, size = 0x4, scoped, tag = 'scoped memory for tpu_custom_call.1']
    #allocation5 [shape = 'u8[2048]{0}', space=vmem, size = 0x800, scoped, tag = 'output window, operand 0, single buffered']
    %7 = vsyncpa [#allocation3], 0
    %8 = vsyncpa [#allocation4], 0
    // Predicated region
    $region2: #{tpu_custom_call.1} parent=1 // pred_check
      _
    $region3: #{tpu_custom_call.1} parent=1 // pred_check_branch
      %10 = sbr.rel (0) target = $region5
    $region4: #{tpu_custom_call.1} parent=1 // pred_region
      %s12 = ssub.s32 64, 64
      %13 = vsyncadd [#allocation3], %s12
      %s15 = sshll.u32 [#allocation2], 4
      %s16 = int_to_ptr.vmem [resolvable:$true] %s15
      %18 = dma.hbm_to_vmem [thread:$0]  %s0, 64, %s16, [#allocation3]
    $region5: #{tpu_custom_call.1} parent=1 // pred_fallthru
      _
    // Predicated region
    $region6: #{tpu_custom_call.1} parent=1 // pred_check
      _
    $region7: #{tpu_custom_call.1} parent=1 // pred_check_branch
      %20 = sbr.rel (0) target = $region9
    $region8: #{tpu_custom_call.1} parent=1 // pred_region
      _
    $region9: #{tpu_custom_call.1} parent=1 // pred_fallthru
      _
    // Predicated region
    $region10: #{tpu_custom_call.1} parent=1 // pred_check
      _
    $region11: #{tpu_custom_call.1} parent=1 // pred_check_branch
      %22 = sbr.rel (0) target = $region13
    $region12: #{tpu_custom_call.1} parent=1 // pred_region
      %23 = dma.done [#allocation3], 64
    $region13: #{tpu_custom_call.1} parent=1 // pred_fallthru
      _
    %v24 = vld [vmem:[#allocation2] sm:$0xf]
    %v25 = vld [vmem:[%s1] sm:$0x3]
    %v27 = vlaneseq
    %v28 = vshrl.u32 %v27, 7
    %v29 = vsub.s32 0, %v28
    %v30 = vrot.slane %v25, %v29
    %v31 = vlaneseq
    %v32 = vshrl.u32 %v31, 7
    %v33 = vsub.s32 1, %v32
    %v34 = vrot.slane %v25, %v33
    %v35 = vcombine.low %v30, %v34
    %v37 = vunpack.c.l.s4 1983009808
    %v38 = vunpack.c.0.s8 %v37
    %v39 = vlaneseq
    %v40 = vshrl.u32 %v39, 7
    %v41 = vsub.s32 %v38, %v40
    %v42 = vrot.slane %v35, %v41
    %v44 = vadd.f32 %v24, %v42
    %45 = vst [vmem:[#allocation5] sm:$0xf] %v44
    // Predicated region
    $region14: #{tpu_custom_call.1} parent=1 // pred_check
      _
    $region15: #{tpu_custom_call.1} parent=1 // pred_check_branch
      %47 = sbr.rel (0) target = $region17
    $region16: #{tpu_custom_call.1} parent=1 // pred_region
      %s49 = ssub.s32 64, 64
      %50 = vsyncadd [#allocation4], %s49
      %s52 = sshll.u32 [#allocation5], 4
      %s53 = int_to_ptr.vmem [resolvable:$true] %s52
      %55 = dma.vmem_to_hbm [thread:$0]  %s53, 64, %s2, [#allocation4]
    $region17: #{tpu_custom_call.1} parent=1 // pred_fallthru
      _
    // Predicated region
    $region18: #{tpu_custom_call.1} parent=1 // pred_check
      _
    $region19: #{tpu_custom_call.1} parent=1 // pred_check_branch
      %57 = sbr.rel (0) target = $region21
    $region20: #{tpu_custom_call.1} parent=1 // pred_region
      %58 = dma.done [#allocation4], 64
    $region21: #{tpu_custom_call.1} parent=1 // pred_fallthru
      _
    %59 = vsyncpa [#allocation3], 1
    %60 = vsyncpa [#allocation4], 1

</llo_original>
